<compile_context>
chip_gen: v5e
topology: v5e:2x2
jax: 0.10.0
libtpu: 0.0.40
codegen_flags: <defaults>
</compile_context>

<pallas_src>
import jax
import jax.numpy as jnp
from jax.experimental import pallas as pl
from jax.experimental.pallas import tpu as pltpu


def _sublane_multiple(dtype):
    # Sub-32-bit dtypes pack along sublanes: 8 rows for f32, 16 for bf16, 32 for int8.
    return max(8, 32 // jnp.dtype(dtype).itemsize)


def _dwconv_residual_kernel(x_ref, w_ref, b_ref, o_ref):
    """x_ref: (1, TC, L) un-padded block; w_ref: (TC, K) with the residual already folded
    into the center tap; b_ref: (TC, 1); o_ref: (1, TC, L).

    out = bias + sum_k w[:, k] * halo(x)[:, :, k : k + L]
    (PyTorch 'same' convention: left pad = (K-1)//2, right pad = K-1-left; cross-corr.)
    """
    K = w_ref.shape[-1]
    left = (K - 1) // 2
    right = (K - 1) - left
    L = o_ref.shape[-1]

    x = x_ref[...]                                   # (1, TC, L), I/O dtype
    w = w_ref[...].astype(jnp.float32)               # (TC, K)
    b = b_ref[...].astype(jnp.float32)               # (TC, 1)

    # Build the halo in VMEM only (no extra HBM traffic).  VALU/XLU work has slack here.
    pieces = []
    if left:
        pieces.append(jnp.zeros(x.shape[:-1] + (left,), x.dtype))
    pieces.append(x)
    if right:
        pieces.append(jnp.zeros(x.shape[:-1] + (right,), x.dtype))
    xh = jnp.concatenate(pieces, axis=-1) if len(pieces) > 1 else x   # (1, TC, L + K - 1)

    # Residual is folded into the center tap, so start the accumulator from the bias.
    acc = jnp.broadcast_to(b[None, :, :], x.shape).astype(jnp.float32)

    # Static unrolled taps: plain shifted slices of the haloed tile, per-tap f32 upcast
    # (no full f32 copy of the tile is kept live).
    for k in range(K):
        acc = acc + w[None, :, k:k + 1] * xh[:, :, k:k + L].astype(jnp.float32)

    o_ref[...] = acc.astype(o_ref.dtype)


def conv_block(x, weight, bias, kernel_size):
    """x: (B, C, L) NCW; weight: (C, 1, K) depthwise; bias: (C,).  Eval-mode forward:
    out = x + dwconv(x)  (dropout is identity)."""
    B, C, L = x.shape
    K = kernel_size
    left = (K - 1) // 2

    # Fold the residual into the conv: x + conv(x) == conv'(x) with center tap + 1.
    w2d = weight.reshape(C, K).astype(jnp.float32)
    w2d = w2d.at[:, left].add(1.0)
    b2d = bias.reshape(C, 1).astype(jnp.float32)

    itemsize = jnp.dtype(x.dtype).itemsize

    # Per-generation VMEM sizing (v5e/v6e 128 MiB, v7x 64 MiB).
    try:
        info = pltpu.get_tpu_info()
        vmem_cap = int(getattr(info, "vmem_capacity_bytes", 64 * 1024 * 1024))
    except Exception:
        vmem_cap = 64 * 1024 * 1024
    vmem_limit = min(vmem_cap - 8 * 1024 * 1024, 96 * 1024 * 1024)   # 56 MiB on v7x, 96 MiB on v5e/v6e
    budget = vmem_limit - 8 * 1024 * 1024                            # headroom for compiler scratch

    def block_bytes(tc):
        io = 2 * 2 * tc * L * itemsize       # double-buffered x + out blocks (I/O dtype)
        halo = tc * (L + K - 1) * itemsize   # in-kernel haloed copy of the tile
        f32_tmp = 2 * tc * L * 4             # f32 accumulator + one per-tap upcast temp
        return io + halo + f32_tmp

    # Largest divisor of C that is a multiple of the dtype sublane size (or C itself)
    # fitting the VMEM budget.
    sub = _sublane_multiple(x.dtype)
    TC = C
    for d in range(C, 0, -1):
        if C % d:
            continue
        if d % sub and d != C:
            continue
        TC = d
        if block_bytes(d) <= budget:
            break
    # TODO(synk): add an L-tile grid axis with a K-1 halo (pl.Element / manual DMA) for
    # the huge-L, tiny-C regime where even the smallest channel tile exceeds the budget.

    # Prefer >= 2 grid steps so both of v7x's TensorCores get work.
    if B * (C // TC) < 2:
        for d in range(TC - 1, 0, -1):
            if C % d == 0 and d % sub == 0:
                TC = d
                break

    # Batch innermost so the (TC, K)/(TC, 1) weight/bias blocks stay resident across
    # consecutive grid steps (no re-DMA of the tiny weight tiles).
    grid = (C // TC, B)

    out = pl.pallas_call(
        _dwconv_residual_kernel,
        out_shape=jax.ShapeDtypeStruct((B, C, L), x.dtype),
        grid_spec=pltpu.PrefetchScalarGridSpec(
            num_scalar_prefetch=0,
            grid=grid,
            in_specs=[
                pl.BlockSpec((1, TC, L), lambda cc, bb: (bb, cc, 0)),
                pl.BlockSpec((TC, K), lambda cc, bb: (cc, 0)),
                pl.BlockSpec((TC, 1), lambda cc, bb: (cc, 0)),
            ],
            out_specs=pl.BlockSpec((1, TC, L), lambda cc, bb: (bb, cc, 0)),
        ),
        compiler_params=pltpu.CompilerParams(
            dimension_semantics=("parallel", "parallel"),
            vmem_limit_bytes=int(vmem_limit),
        ),
    )(x, w2d, b2d)
    return out


def ref_conv_block(x, weight, bias, kernel_size):
    """Pure-JAX reference of the PyTorch forward (eval mode, padding='same')."""
    B, C, L = x.shape
    K = kernel_size
    left = (K - 1) // 2
    right = (K - 1) - left
    xp = jnp.pad(x.astype(jnp.float32), ((0, 0), (0, 0), (left, right)))
    out = jnp.zeros((B, C, L), jnp.float32)
    for k in range(K):
        out = out + weight[:, 0, k].astype(jnp.float32)[None, :, None] * xp[:, :, k:k + L]
    out = out + bias.astype(jnp.float32)[None, :, None]
    return (x.astype(jnp.float32) + out).astype(x.dtype)


if __name__ == "__main__":
    # Module hyperparameters: Conv_Block(dim, kernel_size, d_model, dropout), eval mode.
    dim = 8          # channels
    kernel_size = 3
    seq_len = 64
    batch = 2

    key = jax.random.PRNGKey(0)
    kx, kw, kb = jax.random.split(key, 3)

    x = jax.random.normal(kx, (batch, dim, seq_len), dtype=jnp.float32)
    weight = jax.random.normal(kw, (dim, 1, kernel_size), dtype=jnp.float32) * 0.1
    bias = jax.random.normal(kb, (dim,), dtype=jnp.float32) * 0.1

    out = conv_block(x, weight, bias, kernel_size)
    out = jax.block_until_ready(out)

    expected = ref_conv_block(x, weight, bias, kernel_size)
    assert out.shape == x.shape and out.dtype == x.dtype
    assert jnp.allclose(out, expected, atol=1e-5, rtol=1e-5), "mismatch vs reference"

    print("KERNEL_OK")
</pallas_src>

<mosaic_0001>
module attributes {stable_mosaic.version = 11 : i64} {
  func.func @_dwconv_residual_kernel(%arg0: i32, %arg1: i32, %arg2: memref<1x8x64xf32, #tpu.memory_space<vmem>>, %arg3: memref<8x3xf32, #tpu.memory_space<vmem>>, %arg4: memref<8x1xf32, #tpu.memory_space<vmem>>, %arg5: memref<1x8x64xf32, #tpu.memory_space<vmem>>) attributes {dimension_semantics = [#tpu.dimension_semantics<parallel>, #tpu.dimension_semantics<parallel>], iteration_bounds = array<i64: 1, 2>, scalar_prefetch = 0 : i64, scratch_operands = 0 : i64, tpu.core_type = #tpu.core_type<tc>, window_params = [{transform_indices = @transform_0, window_bounds = array<i64: 1, 8, 64>}, {transform_indices = @transform_1, window_bounds = array<i64: 8, 3>}, {transform_indices = @transform_2, window_bounds = array<i64: 8, 1>}, {transform_indices = @transform_3, window_bounds = array<i64: 1, 8, 64>}]} {
    %c0 = arith.constant 0 : index
    %c0_0 = arith.constant 0 : index
    %c0_1 = arith.constant 0 : index
    %0 = vector.load %arg2[%c0, %c0_0, %c0_1] : memref<1x8x64xf32, #tpu.memory_space<vmem>>, vector<1x8x64xf32>
    %c0_2 = arith.constant 0 : index
    %c0_3 = arith.constant 0 : index
    %1 = vector.load %arg3[%c0_2, %c0_3] : memref<8x3xf32, #tpu.memory_space<vmem>>, vector<8x3xf32>
    %c0_4 = arith.constant 0 : index
    %c0_5 = arith.constant 0 : index
    %2 = vector.load %arg4[%c0_4, %c0_5] : memref<8x1xf32, #tpu.memory_space<vmem>>, vector<8x1xf32>
    %cst = arith.constant 0.000000e+00 : f32
    %3 = vector.broadcast %cst : f32 to vector<1x8x1xf32>
    %cst_6 = arith.constant 0.000000e+00 : f32
    %4 = vector.broadcast %cst_6 : f32 to vector<1x8x1xf32>
    %5 = tpu.concatenate %3, %0, %4 in 2 : vector<1x8x1xf32>, vector<1x8x64xf32>, vector<1x8x1xf32> -> vector<1x8x66xf32>
    %6 = vector.shape_cast %2 : vector<8x1xf32> to vector<1x8x1xf32>
    %7 = vector.shape_cast %6 : vector<1x8x1xf32> to vector<1x8x1xf32>
    %8 = vector.broadcast %7 : vector<1x8x1xf32> to vector<1x8x64xf32>
    %9 = vector.extract_strided_slice %1 {offsets = [0, 0], sizes = [8, 1], strides = [1, 1]} : vector<8x3xf32> to vector<8x1xf32>
    %10 = vector.shape_cast %9 : vector<8x1xf32> to vector<1x8x1xf32>
    %11 = vector.extract_strided_slice %5 {offsets = [0, 0, 0], sizes = [1, 8, 64], strides = [1, 1, 1]} : vector<1x8x66xf32> to vector<1x8x64xf32>
    %12 = vector.broadcast %10 : vector<1x8x1xf32> to vector<1x8x64xf32>
    %13 = arith.mulf %12, %11 : vector<1x8x64xf32>
    %14 = arith.addf %8, %13 : vector<1x8x64xf32>
    %15 = vector.extract_strided_slice %1 {offsets = [0, 1], sizes = [8, 1], strides = [1, 1]} : vector<8x3xf32> to vector<8x1xf32>
    %16 = vector.shape_cast %15 : vector<8x1xf32> to vector<1x8x1xf32>
    %17 = vector.extract_strided_slice %5 {offsets = [0, 0, 1], sizes = [1, 8, 64], strides = [1, 1, 1]} : vector<1x8x66xf32> to vector<1x8x64xf32>
    %18 = vector.broadcast %16 : vector<1x8x1xf32> to vector<1x8x64xf32>
    %19 = arith.mulf %18, %17 : vector<1x8x64xf32>
    %20 = arith.addf %14, %19 : vector<1x8x64xf32>
    %21 = vector.extract_strided_slice %1 {offsets = [0, 2], sizes = [8, 1], strides = [1, 1]} : vector<8x3xf32> to vector<8x1xf32>
    %22 = vector.shape_cast %21 : vector<8x1xf32> to vector<1x8x1xf32>
    %23 = vector.extract_strided_slice %5 {offsets = [0, 0, 2], sizes = [1, 8, 64], strides = [1, 1, 1]} : vector<1x8x66xf32> to vector<1x8x64xf32>
    %24 = vector.broadcast %22 : vector<1x8x1xf32> to vector<1x8x64xf32>
    %25 = arith.mulf %24, %23 : vector<1x8x64xf32>
    %26 = arith.addf %20, %25 : vector<1x8x64xf32>
    %c0_7 = arith.constant 0 : index
    %c0_8 = arith.constant 0 : index
    %c0_9 = arith.constant 0 : index
    %27 = vector.load %arg5[%c0_7, %c0_8, %c0_9] : memref<1x8x64xf32, #tpu.memory_space<vmem>>, vector<1x8x64xf32>
    tpu.vector_store %arg5[%c0_7, %c0_8, %c0_9], %26 {strides = array<i32>} : memref<1x8x64xf32, #tpu.memory_space<vmem>>, vector<1x8x64xf32>,
    return
  }
  func.func @transform_0(%arg0: i32, %arg1: i32) -> (i32, i32, i32) {
    %c0_i32 = arith.constant 0 : i32
    %c0_i32_0 = arith.constant 0 : i32
    return %arg1, %arg0, %c0_i32 : i32, i32, i32
  }
  func.func @transform_1(%arg0: i32, %arg1: i32) -> (i32, i32) {
    %c0_i32 = arith.constant 0 : i32
    %c0_i32_0 = arith.constant 0 : i32
    return %arg0, %c0_i32 : i32, i32
  }
  func.func @transform_2(%arg0: i32, %arg1: i32) -> (i32, i32) {
    %c0_i32 = arith.constant 0 : i32
    %c0_i32_0 = arith.constant 0 : i32
    return %arg0, %c0_i32 : i32, i32
  }
  func.func @transform_3(%arg0: i32, %arg1: i32) -> (i32, i32, i32) {
    %c0_i32 = arith.constant 0 : i32
    %c0_i32_0 = arith.constant 0 : i32
    return %arg1, %arg0, %c0_i32 : i32, i32, i32
  }
}

</mosaic_0001>

<llo_original>
// kernel: tpu_custom_call.1
$region0: #{tpu_custom_call.1}
  #allocation0 [shape = 'u32[]', space=smem, size = 0x4, offset = 0x4, fixed_abs, tag = 'smem constant byte address 0x4 - core index']
  #allocation1 [shape = 'u32[72,128]{1,0:T(1,128)}', space=vmem, size = 0x9000, scoped, tag = 'internal scratch']
  %s0 = inlined_call_operand.vmem [shape: f32[2,8,64], index: 0, kind: input, shape index: {}]
  %s1 = inlined_call_operand.vmem [shape: f32[8,3], index: 1, kind: input, shape index: {}]
  %s2 = inlined_call_operand.vmem [shape: f32[8,1], index: 2, kind: input, shape index: {}]
  %s3 = inlined_call_operand.hbm [shape: f32[2,8,64], index: 3, kind: output, shape index: {}]
  %s4 = sld [smem:[#allocation0]]
  $region45: #{tpu_custom_call.1} parent=0
    _
  %s6 = ssub.s32 1, %s4
  %s7 = scalar_select 0, %s6, %s4
  $region1: #{tpu_custom_call.1} parent=0
    #allocation2 [shape = 'u8[8192]{0}', space=vmem, size = 0x2000, scoped, tag = 'output window, operand 0']
    #allocation3 [shape = 's32[2]{0}', space=sflag, size = 0x8, scoped, tag = 'scoped memory for tpu_custom_call.1']
    %8 = vsyncpa [#allocation3], 0
    %s9 = scalar_lea.sflag [#allocation3], 1
    %10 = vsyncpa %s9, 0
    loop: start=0, step=1, limit=4
    $region2: #{tpu_custom_call.1} parent=1 // loop_pre_header
      _
    $region3: #{tpu_custom_call.1} parent=1 // loop_header
      %s12 = sphi 0, %s16
      %p13 = scmp.ge.s32.totalorder %s12, 4
      %s19 = sphi 0, %s31
      %s20 = sphi 0, %s27
      %s21 = sphi 0, %s19
      %s22 = sphi 0, %s20
      %s23 = sphi 0, %s21
      %s24 = sphi 0, %s22
      %s36 = sphi 0, %s38
      %s39 = sphi 0, %s36
      %s40 = sphi 0, %s39
      %s56 = sphi 0, %s40
      %s62 = sphi 0, %s64
      %s65 = sphi 0, %s62
      %s66 = sphi 0, %s65
      %s82 = sphi 0, %s66
      %s88 = sphi 0, %s90
      %s91 = sphi 0, %s88
      %s92 = sphi 0, %s91
      %s108 = sphi 0, %s92
      %s116 = sphi 0, %s118
      %s119 = sphi 0, %s116
      %s120 = sphi 0, %s119
      %s136 = sphi 0, %s120
    $region4: #{tpu_custom_call.1} parent=1 // loop_header_branch
      %15 = sbr.rel (%p13) target = $region8
    $region5: #{tpu_custom_call.1} parent=1 // loop_body
      %s17 = ssub.s32 %s12, 1
      %s18 = ssub.s32 %s12, 2
      %s25 = sadd.s32 1, %s20
      %p26 = scmp.ge.s32.totalorder %s25, 2
      %s27 = scalar_select %p26, 0, %s25
      %s28 = sadd.s32 1, %s19
      %s29 = scalar_select %p26, %s28, %s19
      %p30 = scmp.ge.s32.totalorder %s29, 1
      %s31 = scalar_select %p30, 0, %s29
      %s32 = ssub.s32 %s20, %s27
      %s33 = ssub.s32 %s19, %s31
      %s34 = sor.u32 %s32, %s33
      %p35 = scmp.eq.s32.totalorder %s34, 0
      %s37 = sadd.s32 %s36, 1
      %s38 = scalar_select %p35, %s36, %s37
      %p41 = pneg %p35
      %p42 = scmp.eq.s32.totalorder %s12, 1
      %p43 = por %p41, %p42
      %p44 = scmp.ne.s32.totalorder %s36, %s39
      %p45 = scmp.eq.s32.totalorder %s12, 0
      %p46 = por %p44, %p45
      %p47 = scmp.ne.s32.totalorder %s36, %s39
      %p48 = scmp.eq.s32.totalorder %s17, 1
      %p49 = por %p47, %p48
      %p50 = scmp.ne.s32.totalorder %s39, %s40
      %p51 = scmp.eq.s32.totalorder %s17, 0
      %p52 = por %p50, %p51
      %p53 = scmp.ne.s32.totalorder %s39, %s40
      %p54 = scmp.eq.s32.totalorder %s18, 1
      %p55 = por %p53, %p54
      %p57 = scmp.ne.s32.totalorder %s40, %s56
      %p58 = scmp.eq.s32.totalorder %s18, 0
      %p59 = por %p57, %p58
      %s60 = ssub.s32 %s19, %s31
      %p61 = scmp.eq.s32.totalorder %s60, 0
      %s63 = sadd.s32 %s62, 1
      %s64 = scalar_select %p61, %s62, %s63
      %p67 = pneg %p61
      %p68 = scmp.eq.s32.totalorder %s12, 1
      %p69 = por %p67, %p68
      %p70 = scmp.ne.s32.totalorder %s62, %s65
      %p71 = scmp.eq.s32.totalorder %s12, 0
      %p72 = por %p70, %p71
      %p73 = scmp.ne.s32.totalorder %s62, %s65
      %p74 = scmp.eq.s32.totalorder %s17, 1
      %p75 = por %p73, %p74
      %p76 = scmp.ne.s32.totalorder %s65, %s66
      %p77 = scmp.eq.s32.totalorder %s17, 0
      %p78 = por %p76, %p77
      %p79 = scmp.ne.s32.totalorder %s65, %s66
      %p80 = scmp.eq.s32.totalorder %s18, 1
      %p81 = por %p79, %p80
      %p83 = scmp.ne.s32.totalorder %s66, %s82
      %p84 = scmp.eq.s32.totalorder %s18, 0
      %p85 = por %p83, %p84
      %s86 = ssub.s32 %s19, %s31
      %p87 = scmp.eq.s32.totalorder %s86, 0
      %s89 = sadd.s32 %s88, 1
      %s90 = scalar_select %p87, %s88, %s89
      %p93 = pneg %p87
      %p94 = scmp.eq.s32.totalorder %s12, 1
      %p95 = por %p93, %p94
      %p96 = scmp.ne.s32.totalorder %s88, %s91
      %p97 = scmp.eq.s32.totalorder %s12, 0
      %p98 = por %p96, %p97
      %p99 = scmp.ne.s32.totalorder %s88, %s91
      %p100 = scmp.eq.s32.totalorder %s17, 1
      %p101 = por %p99, %p100
      %p102 = scmp.ne.s32.totalorder %s91, %s92
      %p103 = scmp.eq.s32.totalorder %s17, 0
      %p104 = por %p102, %p103
      %p105 = scmp.ne.s32.totalorder %s91, %s92
      %p106 = scmp.eq.s32.totalorder %s18, 1
      %p107 = por %p105, %p106
      %p109 = scmp.ne.s32.totalorder %s92, %s108
      %p110 = scmp.eq.s32.totalorder %s18, 0
      %p111 = por %p109, %p110
      %s112 = ssub.s32 %s20, %s27
      %s113 = ssub.s32 %s19, %s31
      %s114 = sor.u32 %s112, %s113
      %p115 = scmp.eq.s32.totalorder %s114, 0
      %s117 = sadd.s32 %s116, 1
      %s118 = scalar_select %p115, %s116, %s117
      %p121 = pneg %p115
      %p122 = scmp.eq.s32.totalorder %s12, 1
      %p123 = por %p121, %p122
      %p124 = scmp.ne.s32.totalorder %s116, %s119
      %p125 = scmp.eq.s32.totalorder %s12, 0
      %p126 = por %p124, %p125
      %p127 = scmp.ne.s32.totalorder %s116, %s119
      %p128 = scmp.eq.s32.totalorder %s17, 1
      %p129 = por %p127, %p128
      %p130 = scmp.ne.s32.totalorder %s119, %s120
      %p131 = scmp.eq.s32.totalorder %s17, 0
      %p132 = por %p130, %p131
      %p133 = scmp.ne.s32.totalorder %s119, %s120
      %p134 = scmp.eq.s32.totalorder %s18, 1
      %p135 = por %p133, %p134
      %p137 = scmp.ne.s32.totalorder %s120, %s136
      %p138 = scmp.eq.s32.totalorder %s18, 0
      %p139 = por %p137, %p138
      %p140 = scmp.le.s32.totalorder 1, %s12
      %p141 = scmp.lt.s32.totalorder %s12, 3
      %p142 = pnand %p140, %p141
      %p143 = pneg %p142
      // Predicated region
      $region9: #{tpu_custom_call.1} parent=5 // pred_check
        _
      $region10: #{tpu_custom_call.1} parent=5 // pred_check_branch
        %145 = sbr.rel (%p142) target = $region12
      $region11: #{tpu_custom_call.1} parent=5 // pred_region
        %s146 = ssub.s32 %s12, 1
        // Predicated region
        $region13: #{tpu_custom_call.1} parent=11 // pred_check
          %p147 = pneg %p78
        $region14: #{tpu_custom_call.1} parent=11 // pred_check_branch
          %149 = sbr.rel (%p147) target = $region16
        $region15: #{tpu_custom_call.1} parent=11 // pred_region
          %p150 = scmp.lt.s32.totalorder %s21, 0
          %s151 = scalar_select %p150, %s21, 0
          %s152 = smul.addr %s151, 8
          %s153 = scalar_lea.vmem %s1, %s152
        $region16: #{tpu_custom_call.1} parent=11 // pred_fallthru
          _
        // Predicated region
        $region17: #{tpu_custom_call.1} parent=11 // pred_check
          %p154 = pneg %p104
        $region18: #{tpu_custom_call.1} parent=11 // pred_check_branch
          %156 = sbr.rel (%p154) target = $region20
        $region19: #{tpu_custom_call.1} parent=11 // pred_region
          %p157 = scmp.lt.s32.totalorder %s21, 0
          %s158 = scalar_select %p157, %s21, 0
          %s159 = smul.addr %s158, 8
          %s160 = scalar_lea.vmem %s2, %s159
        $region20: #{tpu_custom_call.1} parent=11 // pred_fallthru
          _
      $region12: #{tpu_custom_call.1} parent=5 // pred_fallthru
        _
      %p161 = scmp.lt.s32.totalorder %s12, 2
      // Predicated region
      $region21: #{tpu_custom_call.1} parent=5 // pred_check
        %p162 = pneg %p161
      $region22: #{tpu_custom_call.1} parent=5 // pred_check_branch
        %164 = sbr.rel (%p162) target = $region24
      $region23: #{tpu_custom_call.1} parent=5 // pred_region
        // Predicated region
        $region25: #{tpu_custom_call.1} parent=23 // pred_check
          %p165 = pneg %p46
        $region26: #{tpu_custom_call.1} parent=23 // pred_check_branch
          %167 = sbr.rel (%p165) target = $region28
        $region27: #{tpu_custom_call.1} parent=23 // pred_region
          %p168 = scmp.lt.s32.totalorder %s20, 1
          %s169 = scalar_select %p168, %s20, 1
          %p170 = scmp.lt.s32.totalorder %s19, 0
          %s171 = scalar_select %p170, %s19, 0
          %s172 = sadd.s32 %s171, %s169
          %s173 = smul.addr %s172, 8
          %s174 = scalar_lea.vmem %s0, %s173
        $region28: #{tpu_custom_call.1} parent=23 // pred_fallthru
          _
      $region24: #{tpu_custom_call.1} parent=5 // pred_fallthru
        _
      %p175 = scmp.le.s32.totalorder 1, %s12
      %p176 = scmp.lt.s32.totalorder %s12, 3
      %p177 = pnand %p175, %p176
      %p178 = pneg %p177
      // Predicated region
      $region29: #{tpu_custom_call.1} parent=5 // pred_check
        _
      $region30: #{tpu_custom_call.1} parent=5 // pred_check_branch
        %180 = sbr.rel (%p177) target = $region32
      $region31: #{tpu_custom_call.1} parent=5 // pred_region
        %s181 = ssub.s32 %s12, 1
        %p182 = scmp.lt.s32.totalorder %s22, 1
        %s183 = scalar_select %p182, %s22, 1
        %p184 = scmp.lt.s32.totalorder %s21, 0
        %s185 = scalar_select %p184, %s21, 0
        %s186 = sadd.s32 %s185, %s183
        %s187 = smul.addr %s186, 8
        %s188 = scalar_lea.vmem %s0, %s187
        %p189 = pneg %p52
        %p190 = pneg %p49
        %p191 = scmp.lt.s32.totalorder %s21, 0
        %s192 = scalar_select %p191, %s21, 0
        %s193 = smul.addr %s192, 8
        %s194 = scalar_lea.vmem %s1, %s193
        %p195 = pneg %p78
        %p196 = pneg %p75
        %p197 = scmp.lt.s32.totalorder %s21, 0
        %s198 = scalar_select %p197, %s21, 0
        %s199 = smul.addr %s198, 8
        %s200 = scalar_lea.vmem %s2, %s199
        %p201 = pneg %p104
        %p202 = pneg %p101
        %p203 = pneg %p132
        %p204 = pneg %p129
        %s205 = sand.u32 %s119, 1
        %s206 = scalar_lea.sflag [#allocation3], %s205
        %s207 = sand.u32 %s119, 1
        %s208 = smul.addr %s207, 8
        %s209 = scalar_lea.vmem [#allocation2], %s208
        %p210 = scmp.lt.s32.totalorder %s22, 1
        %s211 = scalar_select %p210, %s22, 1
        %p212 = scmp.lt.s32.totalorder %s21, 0
        %s213 = scalar_select %p212, %s21, 0
        %s214 = sadd.s32 %s213, %s211
        %s215 = smul.addr %s214, 8
        %s216 = scalar_lea.vmem %s0, %s215
        %p217 = scmp.lt.s32.totalorder %s21, 0
        %s218 = scalar_select %p217, %s21, 0
        %s219 = smul.addr %s218, 8
        %s220 = scalar_lea.vmem %s1, %s219
        %p221 = scmp.lt.s32.totalorder %s21, 0
        %s222 = scalar_select %p221, %s21, 0
        %s223 = smul.addr %s222, 8
        %s224 = scalar_lea.vmem %s2, %s223
        %v225 = vld [vmem:[%s216] sm:$0xff]
        %v226 = vld [vmem:[%s220] sm:$0xff]
        %v227 = vld [vmem:[%s224] sm:$0xff]
        %229 = vrot.lane.b32.xlu0 %v225, 1
        %v230 = vpop.permute.xlu0 %229
        %vm232 = vcmask 7168
        %v233 = vsel %vm232, 0.0, %v230
        %vm234 = vcmask 531456
        %v235 = vsel %vm234, %v233, 0.0
        %237 = vset.pattern.permute.xlu0 0
        %238 = vperm.xlu0 %237, %v227
        %v239 = vpop.permute.xlu0 %238
        %242 = vset.pattern.permute.xlu0 0
        %243 = vperm.xlu0 %242, %v226
        %v244 = vpop.permute.xlu0 %243
        %v246 = vmul.f32 %v244, %v235
        %v247 = vadd.f32 %v239, %v246
        %248 = vset.pattern.permute.xlu0 1
        %249 = vperm.xlu0 %248, %v226
        %v250 = vpop.permute.xlu0 %249
        %v252 = vmul.f32 %v250, %v235
        %254 = vrot.lane.b32.xlu0 %v252, 127
        %v255 = vpop.permute.xlu0 %254
        %v257 = vadd.f32 %v247, %v255
        %258 = vset.pattern.permute.xlu0 2
        %259 = vperm.xlu0 %258, %v226
        %v260 = vpop.permute.xlu0 %259
        %v262 = vmul.f32 %v260, %v235
        %264 = vrot.lane.b32.xlu0 %v262, 126
        %v265 = vpop.permute.xlu0 %264
        %v267 = vadd.f32 %v257, %v265
        %vm268 = vcmask 523264
        %269 = vst.msk [vmem:[%s209] sm:$0xff] %vm268, %v267
        %s270 = sand.u32 %s119, 1
        %s271 = scalar_lea.sflag [#allocation3], %s270
        %s272 = sand.u32 %s119, 1
        %s273 = smul.addr %s272, 8
        %s274 = scalar_lea.vmem [#allocation2], %s273
        // Predicated region
        $region33: #{tpu_custom_call.1} parent=31 // pred_check
          %p275 = pneg %p129
        $region34: #{tpu_custom_call.1} parent=31 // pred_check_branch
          %277 = sbr.rel (%p275) target = $region36
        $region35: #{tpu_custom_call.1} parent=31 // pred_region
          %279 = vsyncadd %s271, 0
          %s280 = sadd.s32 %s21, %s22
          %s281 = smul.addr %s280, 8
          %s282 = scalar_lea.hbm %s3, %s281
          %s284 = sshll.u32 %s274, 4
          %s285 = int_to_ptr.vmem [resolvable:$true] %s284
          %s286 = sshll.u32 %s282, 4
          %s287 = int_to_ptr.hbm [resolvable:$true] %s286
          %289 = dma.vmem_to_hbm [thread:$0]  %s285, 128, %s287, %s271
        $region36: #{tpu_custom_call.1} parent=31 // pred_fallthru
          _
      $region32: #{tpu_custom_call.1} parent=5 // pred_fallthru
        _
      %p290 = scmp.le.s32.totalorder 2, %s12
      // Predicated region
      $region37: #{tpu_custom_call.1} parent=5 // pred_check
        %p291 = pneg %p290
      $region38: #{tpu_custom_call.1} parent=5 // pred_check_branch
        %293 = sbr.rel (%p291) target = $region40
      $region39: #{tpu_custom_call.1} parent=5 // pred_region
        %s294 = ssub.s32 %s12, 2
        // Predicated region
        $region41: #{tpu_custom_call.1} parent=39 // pred_check
          %p295 = pneg %p135
        $region42: #{tpu_custom_call.1} parent=39 // pred_check_branch
          %297 = sbr.rel (%p295) target = $region44
        $region43: #{tpu_custom_call.1} parent=39 // pred_region
          %s298 = sand.u32 %s120, 1
          %s299 = scalar_lea.sflag [#allocation3], %s298
          %s300 = sand.u32 %s120, 1
          %s301 = smul.addr %s300, 8
          %s302 = scalar_lea.vmem [#allocation2], %s301
          %304 = dma.done %s299, 128
        $region44: #{tpu_custom_call.1} parent=39 // pred_fallthru
          _
      $region40: #{tpu_custom_call.1} parent=5 // pred_fallthru
        _
    $region6: #{tpu_custom_call.1} parent=1 // loop_footer
      %s16 = sadd.s32 1, %s12
    $region7: #{tpu_custom_call.1} parent=1 // loop_footer_branch
      %11 = sbr.rel target = $region3
    $region8: #{tpu_custom_call.1} parent=1 // loop_exit
      _
    %305 = vsyncpa [#allocation3], 1
    %s306 = scalar_lea.sflag [#allocation3], 1
    %307 = vsyncpa %s306, 1

</llo_original>
